<compile_context>
chip_gen: v7x
topology: tpu7x:2x2x1
jax: 0.10.0
libtpu: 0.0.40
codegen_flags: <defaults>
</compile_context>

<pallas_src>
import math
import functools

import jax
import jax.numpy as jnp
from jax import lax
from jax.experimental import pallas as pl
from jax.experimental.pallas import tpu as pltpu


def _round_up(a: int, b: int) -> int:
    return (a + b - 1) // b * b


def _recip(x):
    # EUP approx reciprocal (free slot) + two Newton-Raphson steps on the VPU:
    # effectively f32-exact 1/x without a serializing divide.
    r = pl.reciprocal(x, approx=True)
    r = r * (2.0 - x * r)
    r = r * (2.0 - x * r)
    return r


def _memory_kernel(x_ref, mem_ref, out_ref, att_ref, *,
                   shrink_thres, m_valid, m_total):
    # Feed the MXU in the native input dtype (bf16 stays bf16), accumulate in f32.
    x = x_ref[...]        # [tn, Cp]
    mem = mem_ref[...]    # [Mp, Cp]

    # att = x @ mem.T, contracting the feature (lane) dim of both operands:
    # no transpose of mem is materialized.
    att = lax.dot_general(
        x, mem,
        dimension_numbers=(((1,), (1,)), ((), ())),
        preferred_element_type=jnp.float32,
    )  # [tn, Mp] f32

    # Mask out padded memory slots (M was lane-padded up to m_total).
    if m_valid < m_total:
        col = lax.broadcasted_iota(jnp.int32, att.shape, 1)
        att = jnp.where(col < m_valid, att, -jnp.inf)

    # softmax over the slot axis
    att = att - jnp.max(att, axis=-1, keepdims=True)
    e = jnp.exp(att)
    att = e * _recip(jnp.sum(e, axis=-1, keepdims=True))

    # hard_shrink_relu + L1 normalize (static branch, matches PyTorch)
    if shrink_thres > 0:
        t = att - shrink_thres
        att = jnp.maximum(t, 0.0) * att * _recip(jnp.abs(t) + 1e-12)
        l1 = jnp.sum(jnp.abs(att), axis=-1, keepdims=True)
        att = att * _recip(jnp.maximum(l1, 1e-12))

    # out = att @ mem + 0.9 * x   (second MXU matmul, f32 accumulation)
    out = jnp.dot(att.astype(mem_ref.dtype), mem,
                  preferred_element_type=jnp.float32)
    out = out + 0.9 * x.astype(jnp.float32)

    out_ref[...] = out.astype(out_ref.dtype)
    # NOTE: att_weight is cast to x.dtype to mirror the PyTorch module; keep it
    # f32 downstream if x is bf16 and the loss needs the extra precision.
    att_ref[...] = att.astype(att_ref.dtype)


def memory_hf2vad_forward(x, mem_matrix, shrink_thres=0.0005, *,
                          tile_n=256, vmem_budget_bytes=40 * 1024 * 1024):
    """x: [N, C], mem_matrix: [M, C]. Returns dict(out=[N, C], att_weight=[N, M])."""
    N, C = x.shape
    M, C2 = mem_matrix.shape
    assert C == C2, "feature dim of x must equal memory slot dim"

    # Lane-pad feature and slot dims to multiples of 128 (dense vregs, unmasked stores).
    C_pad = _round_up(C, 128)
    M_pad = _round_up(M, 128)

    x_bytes = jnp.dtype(x.dtype).itemsize
    m_bytes = jnp.dtype(mem_matrix.dtype).itemsize

    # Choose tile_n: multiple of 8, no larger than needed, keep >= 2 grid steps
    # when N allows (v7x megacore), and shrink until the VMEM estimate fits.
    tn = max(8, _round_up(min(tile_n, N), 8))
    tn = min(tn, max(8, _round_up(pl.cdiv(N, 2), 8)))

    def vmem_estimate(t):
        # double-buffered x / out / att blocks + double-buffered mem block
        blocks = (2 * t * C_pad * x_bytes * 2          # x tile + out tile
                  + 2 * t * M_pad * x_bytes            # att tile
                  + 2 * M_pad * C_pad * m_bytes)       # memory matrix
        scratch = 4 * t * (M_pad + 2 * C_pad)          # rough f32 intermediates
        return blocks + scratch

    while tn > 8 and vmem_estimate(tn) > vmem_budget_bytes:
        tn = max(8, _round_up(tn // 2, 8))

    N_pad = _round_up(N, tn)

    # Zero-pad inputs (numerically inert: padded feature columns are zero in both
    # operands, padded slot rows are masked to -inf pre-softmax, padded query
    # rows are sliced off on the way out).
    x_p = x
    if (N_pad, C_pad) != (N, C):
        x_p = jnp.pad(x, ((0, N_pad - N), (0, C_pad - C)))
    mem_p = mem_matrix
    if (M_pad, C_pad) != (M, C):
        mem_p = jnp.pad(mem_matrix, ((0, M_pad - M), (0, C_pad - C)))

    kernel = functools.partial(
        _memory_kernel, shrink_thres=shrink_thres, m_valid=M, m_total=M_pad)

    # Explicit VMEM limit: enough headroom for the chosen tile, capped well below
    # v7x's 64 MiB physical VMEM (also fine on v5e/v6e's 128 MiB).
    vmem_limit = int(min(max(2 * vmem_estimate(tn), 16 * 1024 * 1024),
                         48 * 1024 * 1024))

    out_p, att_p = pl.pallas_call(
        kernel,
        out_shape=(
            jax.ShapeDtypeStruct((N_pad, C_pad), x.dtype),
            jax.ShapeDtypeStruct((N_pad, M_pad), x.dtype),
        ),
        grid_spec=pltpu.PrefetchScalarGridSpec(
            num_scalar_prefetch=0,
            grid=(N_pad // tn,),
            in_specs=[
                pl.BlockSpec((tn, C_pad), lambda i: (i, 0)),     # x tile
                # Full memory matrix; constant block index -> Pallas skips the
                # re-DMA across grid steps.
                pl.BlockSpec((M_pad, C_pad), lambda i: (0, 0)),
            ],
            out_specs=[
                pl.BlockSpec((tn, C_pad), lambda i: (i, 0)),     # out tile
                pl.BlockSpec((tn, M_pad), lambda i: (i, 0)),     # att tile
            ],
        ),
        compiler_params=pltpu.CompilerParams(
            dimension_semantics=("parallel",),
            vmem_limit_bytes=vmem_limit,
        ),
    )(x_p, mem_p)

    out = out_p[:N, :C]
    att = att_p[:N, :M]
    return dict(out=out, att_weight=att)


def _reference(x, mem, shrink_thres):
    # pure-JAX reference of the PyTorch forward
    att = x @ mem.T
    att = jax.nn.softmax(att, axis=1)
    if shrink_thres > 0:
        t = att - shrink_thres
        att = jnp.maximum(t, 0.0) * att / (jnp.abs(t) + 1e-12)
        att = att / jnp.maximum(jnp.sum(jnp.abs(att), axis=1, keepdims=True), 1e-12)
    out = att @ mem + 0.9 * x
    return out, att


if __name__ == "__main__":
    # Small shapes consistent with the module: N query items x C features,
    # M memory slots.  N and M are intentionally not tile/lane aligned to
    # exercise the padding + masking path.
    N, C, M = 20, 128, 64
    shrink_thres = 0.0005

    key = jax.random.PRNGKey(0)
    kx, kmem = jax.random.split(key)

    x = jax.random.normal(kx, (N, C), dtype=jnp.float32)

    # deterministic init mirroring reset_parameters(): uniform(-stdv, stdv), stdv = 1/sqrt(slot_dim)
    stdv = 1.0 / math.sqrt(C)
    mem_matrix = jax.random.uniform(kmem, (M, C), dtype=jnp.float32,
                                    minval=-stdv, maxval=stdv)

    result = memory_hf2vad_forward(x, mem_matrix, shrink_thres=shrink_thres)
    out = jax.block_until_ready(result["out"])
    att = jax.block_until_ready(result["att_weight"])

    ref_out, ref_att = _reference(x, mem_matrix, shrink_thres)
    assert out.shape == (N, C) and att.shape == (N, M)
    assert jnp.allclose(out, ref_out, atol=2e-5, rtol=2e-5), "out mismatch"
    assert jnp.allclose(att, ref_att, atol=2e-5, rtol=2e-5), "att_weight mismatch"

    print("KERNEL_OK")
</pallas_src>

<mosaic_0001>
module attributes {stable_mosaic.version = 11 : i64} {
  func.func @_memory_kernel(%arg0: i32, %arg1: memref<16x128xf32, #tpu.memory_space<vmem>>, %arg2: memref<128x128xf32, #tpu.memory_space<vmem>>, %arg3: memref<16x128xf32, #tpu.memory_space<vmem>>, %arg4: memref<16x128xf32, #tpu.memory_space<vmem>>) attributes {dimension_semantics = [#tpu.dimension_semantics<parallel>], iteration_bounds = array<i64: 2>, scalar_prefetch = 0 : i64, scratch_operands = 0 : i64, tpu.core_type = #tpu.core_type<tc>, window_params = [{transform_indices = @transform_0, window_bounds = array<i64: 16, 128>}, {pipeline_mode = #tpu.pipeline_mode<synchronous>, transform_indices = @transform_1, window_bounds = array<i64: 128, 128>}, {transform_indices = @transform_2, window_bounds = array<i64: 16, 128>}, {transform_indices = @transform_3, window_bounds = array<i64: 16, 128>}]} {
    %c0 = arith.constant 0 : index
    %c0_0 = arith.constant 0 : index
    %0 = vector.load %arg1[%c0, %c0_0] : memref<16x128xf32, #tpu.memory_space<vmem>>, vector<16x128xf32>
    %c0_1 = arith.constant 0 : index
    %c0_2 = arith.constant 0 : index
    %1 = vector.load %arg2[%c0_1, %c0_2] : memref<128x128xf32, #tpu.memory_space<vmem>>, vector<128x128xf32>
    %cst = arith.constant dense<0.000000e+00> : vector<16x128xf32>
    %2 = tpu.matmul %0, %1, %cst {dimension_numbers = #tpu.dot_dimension_numbers<[1], [1], [0], [0], [0, 0, 1, 0], [], []>} : vector<16x128xf32>, vector<128x128xf32>, vector<16x128xf32> -> vector<16x128xf32>
    %3 = tpu.iota {dimensions = array<i32: 1>} : vector<16x128xi32>
    %c64_i32 = arith.constant 64 : i32
    %4 = vector.broadcast %c64_i32 : i32 to vector<16x128xi32>
    %5 = arith.cmpi slt, %3, %4 : vector<16x128xi32>
    %cst_3 = arith.constant 0xFF800000 : f32
    %6 = vector.broadcast %cst_3 : f32 to vector<16x128xf32>
    %7 = arith.select %5, %2, %6 : vector<16x128xi1>, vector<16x128xf32>
    %cst_4 = arith.constant dense<0xFF800000> : vector<16xf32>
    %8 = vector.multi_reduction <maximumf>, %7, %cst_4 [1] : vector<16x128xf32> to vector<16xf32>
    %9 = vector.shape_cast %8 : vector<16xf32> to vector<16x1xf32>
    %10 = vector.broadcast %9 : vector<16x1xf32> to vector<16x128xf32>
    %11 = arith.subf %7, %10 : vector<16x128xf32>
    %12 = math.exp %11 : vector<16x128xf32>
    %cst_5 = arith.constant dense<0.000000e+00> : vector<16xf32>
    %13 = vector.multi_reduction <add>, %12, %cst_5 [1] : vector<16x128xf32> to vector<16xf32>
    %14 = vector.shape_cast %13 : vector<16xf32> to vector<16x1xf32>
    %15 = tpu.reciprocal %14 {approx = true} : vector<16x1xf32> -> vector<16x1xf32>
    %16 = arith.mulf %14, %15 : vector<16x1xf32>
    %cst_6 = arith.constant 2.000000e+00 : f32
    %17 = vector.broadcast %cst_6 : f32 to vector<16x1xf32>
    %18 = arith.subf %17, %16 : vector<16x1xf32>
    %19 = arith.mulf %15, %18 : vector<16x1xf32>
    %20 = arith.mulf %14, %19 : vector<16x1xf32>
    %cst_7 = arith.constant 2.000000e+00 : f32
    %21 = vector.broadcast %cst_7 : f32 to vector<16x1xf32>
    %22 = arith.subf %21, %20 : vector<16x1xf32>
    %23 = arith.mulf %19, %22 : vector<16x1xf32>
    %24 = vector.broadcast %23 : vector<16x1xf32> to vector<16x128xf32>
    %25 = arith.mulf %12, %24 : vector<16x128xf32>
    %cst_8 = arith.constant 5.000000e-04 : f32
    %26 = vector.broadcast %cst_8 : f32 to vector<16x128xf32>
    %27 = arith.subf %25, %26 : vector<16x128xf32>
    %cst_9 = arith.constant 0.000000e+00 : f32
    %28 = vector.broadcast %cst_9 : f32 to vector<16x128xf32>
    %29 = arith.maximumf %27, %28 : vector<16x128xf32>
    %30 = arith.mulf %29, %25 : vector<16x128xf32>
    %31 = math.absf %27 : vector<16x128xf32>
    %cst_10 = arith.constant 9.99999996E-13 : f32
    %32 = vector.broadcast %cst_10 : f32 to vector<16x128xf32>
    %33 = arith.addf %31, %32 : vector<16x128xf32>
    %34 = tpu.reciprocal %33 {approx = true} : vector<16x128xf32> -> vector<16x128xf32>
    %35 = arith.mulf %33, %34 : vector<16x128xf32>
    %cst_11 = arith.constant 2.000000e+00 : f32
    %36 = vector.broadcast %cst_11 : f32 to vector<16x128xf32>
    %37 = arith.subf %36, %35 : vector<16x128xf32>
    %38 = arith.mulf %34, %37 : vector<16x128xf32>
    %39 = arith.mulf %33, %38 : vector<16x128xf32>
    %cst_12 = arith.constant 2.000000e+00 : f32
    %40 = vector.broadcast %cst_12 : f32 to vector<16x128xf32>
    %41 = arith.subf %40, %39 : vector<16x128xf32>
    %42 = arith.mulf %38, %41 : vector<16x128xf32>
    %43 = arith.mulf %30, %42 : vector<16x128xf32>
    %44 = math.absf %43 : vector<16x128xf32>
    %cst_13 = arith.constant dense<0.000000e+00> : vector<16xf32>
    %45 = vector.multi_reduction <add>, %44, %cst_13 [1] : vector<16x128xf32> to vector<16xf32>
    %46 = vector.shape_cast %45 : vector<16xf32> to vector<16x1xf32>
    %cst_14 = arith.constant 9.99999996E-13 : f32
    %47 = vector.broadcast %cst_14 : f32 to vector<16x1xf32>
    %48 = arith.maximumf %46, %47 : vector<16x1xf32>
    %49 = tpu.reciprocal %48 {approx = true} : vector<16x1xf32> -> vector<16x1xf32>
    %50 = arith.mulf %48, %49 : vector<16x1xf32>
    %cst_15 = arith.constant 2.000000e+00 : f32
    %51 = vector.broadcast %cst_15 : f32 to vector<16x1xf32>
    %52 = arith.subf %51, %50 : vector<16x1xf32>
    %53 = arith.mulf %49, %52 : vector<16x1xf32>
    %54 = arith.mulf %48, %53 : vector<16x1xf32>
    %cst_16 = arith.constant 2.000000e+00 : f32
    %55 = vector.broadcast %cst_16 : f32 to vector<16x1xf32>
    %56 = arith.subf %55, %54 : vector<16x1xf32>
    %57 = arith.mulf %53, %56 : vector<16x1xf32>
    %58 = vector.broadcast %57 : vector<16x1xf32> to vector<16x128xf32>
    %59 = arith.mulf %43, %58 : vector<16x128xf32>
    %cst_17 = arith.constant dense<0.000000e+00> : vector<16x128xf32>
    %60 = tpu.matmul %59, %1, %cst_17 {dimension_numbers = #tpu.dot_dimension_numbers<[1], [0], [0], [1], [0, 0, 1, 1], [], []>} : vector<16x128xf32>, vector<128x128xf32>, vector<16x128xf32> -> vector<16x128xf32>
    %cst_18 = arith.constant 0.899999976 : f32
    %61 = vector.broadcast %cst_18 : f32 to vector<16x128xf32>
    %62 = arith.mulf %61, %0 : vector<16x128xf32>
    %63 = arith.addf %60, %62 : vector<16x128xf32>
    %c0_19 = arith.constant 0 : index
    %c0_20 = arith.constant 0 : index
    %64 = vector.load %arg3[%c0_19, %c0_20] : memref<16x128xf32, #tpu.memory_space<vmem>>, vector<16x128xf32>
    tpu.vector_store %arg3[%c0_19, %c0_20], %63 {strides = array<i32>} : memref<16x128xf32, #tpu.memory_space<vmem>>, vector<16x128xf32>,
    %c0_21 = arith.constant 0 : index
    %c0_22 = arith.constant 0 : index
    %65 = vector.load %arg4[%c0_21, %c0_22] : memref<16x128xf32, #tpu.memory_space<vmem>>, vector<16x128xf32>
    tpu.vector_store %arg4[%c0_21, %c0_22], %59 {strides = array<i32>} : memref<16x128xf32, #tpu.memory_space<vmem>>, vector<16x128xf32>,
    return
  }
  func.func @transform_0(%arg0: i32) -> (i32, i32) {
    %c0_i32 = arith.constant 0 : i32
    %c0_i32_0 = arith.constant 0 : i32
    return %arg0, %c0_i32 : i32, i32
  }
  func.func @transform_1(%arg0: i32) -> (i32, i32) {
    %c0_i32 = arith.constant 0 : i32
    %c0_i32_0 = arith.constant 0 : i32
    %c0_i32_1 = arith.constant 0 : i32
    return %c0_i32, %c0_i32_0 : i32, i32
  }
  func.func @transform_2(%arg0: i32) -> (i32, i32) {
    %c0_i32 = arith.constant 0 : i32
    %c0_i32_0 = arith.constant 0 : i32
    return %arg0, %c0_i32 : i32, i32
  }
  func.func @transform_3(%arg0: i32) -> (i32, i32) {
    %c0_i32 = arith.constant 0 : i32
    %c0_i32_0 = arith.constant 0 : i32
    return %arg0, %c0_i32 : i32, i32
  }
}

</mosaic_0001>

<llo_original>
// kernel: tpu_custom_call.1
$region0: #{tpu_custom_call.1}
  #allocation0 [shape = 'u32[]', space=smem, size = 0x4, offset = 0x4, fixed_abs, tag = 'smem constant byte address 0x4 - core index']
  #allocation1 [shape = 'u32[144,128]{1,0:T(1,128)}', space=vmem, size = 0x12000, scoped, tag = 'internal scratch']
  %s0 = inlined_call_operand.hbm [shape: f32[32,128], index: 0, kind: input, shape index: {}]
  %s1 = inlined_call_operand.hbm [shape: f32[128,128], index: 1, kind: input, shape index: {}]
  %s2 = inlined_call_operand.hbm [shape: f32[32,128], index: 2, kind: output, shape index: {0}]
  %s3 = inlined_call_operand.hbm [shape: f32[32,128], index: 3, kind: output, shape index: {1}]
  %4 = xla_tuple %s2, %s3
  %s5 = sld [smem:[#allocation0]]
  $region57: #{tpu_custom_call.1} parent=0
    _
  %s7 = ssub.s32 1, %s5
  %s8 = scalar_select 0, %s7, %s5
  $region1: #{tpu_custom_call.1} parent=0
    #allocation2 [shape = 'u8[16384]{0}', space=vmem, size = 0x4000, scoped, tag = 'input window, operand 0']
    #allocation3 [shape = 's32[2]{0}', space=sflag, size = 0x8, scoped, tag = 'scoped memory for tpu_custom_call.1']
    #allocation4 [shape = 's32[2]{0}', space=sflag, size = 0x8, scoped, tag = 'scoped memory for tpu_custom_call.1']
    #allocation5 [shape = 'u8[65536]{0}', space=vmem, size = 0x10000, scoped, tag = 'input window, operand 1, single buffered']
    #allocation6 [shape = 's32[1]{0}', space=sflag, size = 0x4, scoped, tag = 'scoped memory for tpu_custom_call.1']
    #allocation7 [shape = 'u8[16384]{0}', space=vmem, size = 0x4000, scoped, tag = 'output window, operand 0']
    #allocation8 [shape = 'u8[16384]{0}', space=vmem, size = 0x4000, scoped, tag = 'output window, operand 1']
    #allocation9 [shape = 's32[2]{0}', space=sflag, size = 0x8, scoped, tag = 'scoped memory for tpu_custom_call.1']
    %9 = vsyncpa [#allocation3], 0
    %s10 = scalar_lea.sflag [#allocation3], 1
    %11 = vsyncpa %s10, 0
    %12 = vsyncpa [#allocation6], 0
    %13 = vsyncpa [#allocation4], 0
    %s14 = scalar_lea.sflag [#allocation4], 1
    %15 = vsyncpa %s14, 0
    %16 = vsyncpa [#allocation9], 0
    %s17 = scalar_lea.sflag [#allocation9], 1
    %18 = vsyncpa %s17, 0
    loop: start=0, step=1, limit=4
    $region2: #{tpu_custom_call.1} parent=1 // loop_pre_header
      _
    $region3: #{tpu_custom_call.1} parent=1 // loop_header
      %s20 = sphi 0, %s24
      %p21 = scmp.ge.s32.totalorder %s20, 4
      %s30 = sphi 0, %s32
      %s33 = sphi 0, %s30
      %s34 = sphi 0, %s33
      %s50 = sphi 0, %s34
      %s54 = sphi 0, %s54
      %s56 = sphi 0, %s54
      %s57 = sphi 0, %s56
      %s71 = sphi 0, %s57
      %s77 = sphi 0, %s79
      %s80 = sphi 0, %s77
      %s81 = sphi 0, %s80
      %s97 = sphi 0, %s81
      %s103 = sphi 0, %s105
      %s106 = sphi 0, %s103
      %s107 = sphi 0, %s106
      %s123 = sphi 0, %s107
    $region4: #{tpu_custom_call.1} parent=1 // loop_header_branch
      %23 = sbr.rel (%p21) target = $region8
    $region5: #{tpu_custom_call.1} parent=1 // loop_body
      %s25 = ssub.s32 %s20, 1
      %s26 = ssub.s32 %s20, 2
      %s27 = sadd.s32 %s20, 1
      %s28 = ssub.s32 %s20, %s27
      %p29 = scmp.eq.s32.totalorder %s28, 0
      %s31 = sadd.s32 %s30, 1
      %s32 = scalar_select %p29, %s30, %s31
      %p35 = pneg %p29
      %p36 = scmp.eq.s32.totalorder %s20, 1
      %p37 = por %p35, %p36
      %p38 = scmp.ne.s32.totalorder %s30, %s33
      %p39 = scmp.eq.s32.totalorder %s20, 0
      %p40 = por %p38, %p39
      %p41 = scmp.ne.s32.totalorder %s30, %s33
      %p42 = scmp.eq.s32.totalorder %s25, 1
      %p43 = por %p41, %p42
      %p44 = scmp.ne.s32.totalorder %s33, %s34
      %p45 = scmp.eq.s32.totalorder %s25, 0
      %p46 = por %p44, %p45
      %p47 = scmp.ne.s32.totalorder %s33, %s34
      %p48 = scmp.eq.s32.totalorder %s26, 1
      %p49 = por %p47, %p48
      %p51 = scmp.ne.s32.totalorder %s34, %s50
      %p52 = scmp.eq.s32.totalorder %s26, 0
      %p53 = por %p51, %p52
      %s55 = sadd.s32 %s54, 1
      %p58 = scmp.eq.s32.totalorder %s20, 1
      %p59 = scmp.ne.s32.totalorder %s54, %s56
      %p60 = scmp.eq.s32.totalorder %s20, 0
      %p61 = por %p59, %p60
      %p62 = scmp.ne.s32.totalorder %s54, %s56
      %p63 = scmp.eq.s32.totalorder %s25, 1
      %p64 = por %p62, %p63
      %p65 = scmp.ne.s32.totalorder %s56, %s57
      %p66 = scmp.eq.s32.totalorder %s25, 0
      %p67 = por %p65, %p66
      %p68 = scmp.ne.s32.totalorder %s56, %s57
      %p69 = scmp.eq.s32.totalorder %s26, 1
      %p70 = por %p68, %p69
      %p72 = scmp.ne.s32.totalorder %s57, %s71
      %p73 = scmp.eq.s32.totalorder %s26, 0
      %p74 = por %p72, %p73
      %s75 = ssub.s32 %s20, %s27
      %p76 = scmp.eq.s32.totalorder %s75, 0
      %s78 = sadd.s32 %s77, 1
      %s79 = scalar_select %p76, %s77, %s78
      %p82 = pneg %p76
      %p83 = scmp.eq.s32.totalorder %s20, 1
      %p84 = por %p82, %p83
      %p85 = scmp.ne.s32.totalorder %s77, %s80
      %p86 = scmp.eq.s32.totalorder %s20, 0
      %p87 = por %p85, %p86
      %p88 = scmp.ne.s32.totalorder %s77, %s80
      %p89 = scmp.eq.s32.totalorder %s25, 1
      %p90 = por %p88, %p89
      %p91 = scmp.ne.s32.totalorder %s80, %s81
      %p92 = scmp.eq.s32.totalorder %s25, 0
      %p93 = por %p91, %p92
      %p94 = scmp.ne.s32.totalorder %s80, %s81
      %p95 = scmp.eq.s32.totalorder %s26, 1
      %p96 = por %p94, %p95
      %p98 = scmp.ne.s32.totalorder %s81, %s97
      %p99 = scmp.eq.s32.totalorder %s26, 0
      %p100 = por %p98, %p99
      %s101 = ssub.s32 %s20, %s27
      %p102 = scmp.eq.s32.totalorder %s101, 0
      %s104 = sadd.s32 %s103, 1
      %s105 = scalar_select %p102, %s103, %s104
      %p108 = pneg %p102
      %p109 = scmp.eq.s32.totalorder %s20, 1
      %p110 = por %p108, %p109
      %p111 = scmp.ne.s32.totalorder %s103, %s106
      %p112 = scmp.eq.s32.totalorder %s20, 0
      %p113 = por %p111, %p112
      %p114 = scmp.ne.s32.totalorder %s103, %s106
      %p115 = scmp.eq.s32.totalorder %s25, 1
      %p116 = por %p114, %p115
      %p117 = scmp.ne.s32.totalorder %s106, %s107
      %p118 = scmp.eq.s32.totalorder %s25, 0
      %p119 = por %p117, %p118
      %p120 = scmp.ne.s32.totalorder %s106, %s107
      %p121 = scmp.eq.s32.totalorder %s26, 1
      %p122 = por %p120, %p121
      %p124 = scmp.ne.s32.totalorder %s107, %s123
      %p125 = scmp.eq.s32.totalorder %s26, 0
      %p126 = por %p124, %p125
      %p127 = scmp.le.s32.totalorder 1, %s20
      %p128 = scmp.lt.s32.totalorder %s20, 3
      %p129 = pnand %p127, %p128
      %p130 = pneg %p129
      // Predicated region
      $region9: #{tpu_custom_call.1} parent=5 // pred_check
        _
      $region10: #{tpu_custom_call.1} parent=5 // pred_check_branch
        %132 = sbr.rel (%p129) target = $region12
      $region11: #{tpu_custom_call.1} parent=5 // pred_region
        %s133 = ssub.s32 %s20, 1
        // Predicated region
        $region13: #{tpu_custom_call.1} parent=11 // pred_check
          %p134 = pneg %p67
        $region14: #{tpu_custom_call.1} parent=11 // pred_check_branch
          %136 = sbr.rel (%p134) target = $region16
        $region15: #{tpu_custom_call.1} parent=11 // pred_region
          %s138 = ssub.s32 2048, 2048
          %139 = vsyncadd [#allocation6], %s138
          %s140 = sshll.u32 [#allocation5], 4
          %s141 = int_to_ptr.vmem [resolvable:$true] %s140
          %146 = dma.hbm_to_vmem [thread:$0]  %s1, 2048, %s141, [#allocation6], 128, 128, 8
        $region16: #{tpu_custom_call.1} parent=11 // pred_fallthru
          _
      $region12: #{tpu_custom_call.1} parent=5 // pred_fallthru
        _
      %p147 = scmp.lt.s32.totalorder %s20, 2
      // Predicated region
      $region17: #{tpu_custom_call.1} parent=5 // pred_check
        %p148 = pneg %p147
      $region18: #{tpu_custom_call.1} parent=5 // pred_check_branch
        %150 = sbr.rel (%p148) target = $region20
      $region19: #{tpu_custom_call.1} parent=5 // pred_region
        // Predicated region
        $region21: #{tpu_custom_call.1} parent=19 // pred_check
          %p151 = pneg %p40
        $region22: #{tpu_custom_call.1} parent=19 // pred_check_branch
          %153 = sbr.rel (%p151) target = $region24
        $region23: #{tpu_custom_call.1} parent=19 // pred_region
          %s154 = sand.u32 %s30, 1
          %s155 = scalar_lea.sflag [#allocation3], %s154
          %s156 = sand.u32 %s30, 1
          %s157 = smul.addr %s156, 16
          %s158 = scalar_lea.vmem [#allocation2], %s157
          %s159 = smul.u32 2, %s20
          %s161 = ssub.s32 256, 256
          %162 = vsyncadd %s155, %s161
          %s163 = smul.addr %s159, 128
          %s164 = scalar_lea.hbm %s0, %s163
          %s165 = sshll.u32 %s158, 4
          %s166 = int_to_ptr.vmem [resolvable:$true] %s165
          %171 = dma.hbm_to_vmem [thread:$0]  %s164, 256, %s166, %s155, 128, 128, 8
        $region24: #{tpu_custom_call.1} parent=19 // pred_fallthru
          _
      $region20: #{tpu_custom_call.1} parent=5 // pred_fallthru
        _
      %p172 = scmp.le.s32.totalorder 1, %s20
      %p173 = scmp.lt.s32.totalorder %s20, 3
      %p174 = pnand %p172, %p173
      %p175 = pneg %p174
      // Predicated region
      $region25: #{tpu_custom_call.1} parent=5 // pred_check
        _
      $region26: #{tpu_custom_call.1} parent=5 // pred_check_branch
        %177 = sbr.rel (%p174) target = $region28
      $region27: #{tpu_custom_call.1} parent=5 // pred_region
        %s178 = ssub.s32 %s20, 1
        %s179 = sand.u32 %s33, 1
        %s180 = scalar_lea.sflag [#allocation3], %s179
        %s181 = sand.u32 %s33, 1
        %s182 = smul.addr %s181, 16
        %s183 = scalar_lea.vmem [#allocation2], %s182
        // Predicated region
        $region29: #{tpu_custom_call.1} parent=27 // pred_check
          %p184 = pneg %p46
        $region30: #{tpu_custom_call.1} parent=27 // pred_check_branch
          %186 = sbr.rel (%p184) target = $region32
        $region31: #{tpu_custom_call.1} parent=27 // pred_region
          %187 = dma.done %s180, 256
        $region32: #{tpu_custom_call.1} parent=27 // pred_fallthru
          _
        // Predicated region
        $region33: #{tpu_custom_call.1} parent=27 // pred_check
          %p188 = pneg %p67
        $region34: #{tpu_custom_call.1} parent=27 // pred_check_branch
          %190 = sbr.rel (%p188) target = $region36
        $region35: #{tpu_custom_call.1} parent=27 // pred_region
          %191 = dma.done [#allocation6], 2048
        $region36: #{tpu_custom_call.1} parent=27 // pred_fallthru
          _
        %s192 = sand.u32 %s33, 1
        %s193 = scalar_lea.sflag [#allocation3], %s192
        %s194 = sand.u32 %s33, 1
        %s195 = smul.addr %s194, 16
        %s196 = scalar_lea.vmem [#allocation2], %s195
        %p197 = pneg %p46
        %p198 = pneg %p43
        %p199 = pneg %p67
        %p200 = pneg %p64
        %p201 = pneg %p93
        %p202 = pneg %p90
        %s203 = sand.u32 %s80, 1
        %s204 = scalar_lea.sflag [#allocation4], %s203
        %s205 = sand.u32 %s80, 1
        %s206 = smul.addr %s205, 16
        %s207 = scalar_lea.vmem [#allocation7], %s206
        %p208 = pneg %p119
        %p209 = pneg %p116
        %s210 = sand.u32 %s106, 1
        %s211 = scalar_lea.sflag [#allocation9], %s210
        %s212 = sand.u32 %s106, 1
        %s213 = smul.addr %s212, 16
        %s214 = scalar_lea.vmem [#allocation8], %s213
        %s215 = smul.u32 2, %s25
        %s216 = smul.u32 2, %s25
        %s217 = smul.u32 2, %s25
        %v218 = vld [vmem:[%s183] sm:$0xff]
        %v219 = vld [vmem:[%s183 + $0x8] sm:$0xff]
        %v220 = vld [vmem:[#allocation5] sm:$0xff]
        %v221 = vld [vmem:[#allocation5 + $0x8] sm:$0xff]
        %v222 = vld [vmem:[#allocation5 + $0x10] sm:$0xff]
        %v223 = vld [vmem:[#allocation5 + $0x18] sm:$0xff]
        %v224 = vld [vmem:[#allocation5 + $0x20] sm:$0xff]
        %v225 = vld [vmem:[#allocation5 + $0x28] sm:$0xff]
        %v226 = vld [vmem:[#allocation5 + $0x30] sm:$0xff]
        %v227 = vld [vmem:[#allocation5 + $0x38] sm:$0xff]
        %v228 = vld [vmem:[#allocation5 + $0x40] sm:$0xff]
        %v229 = vld [vmem:[#allocation5 + $0x48] sm:$0xff]
        %v230 = vld [vmem:[#allocation5 + $0x50] sm:$0xff]
        %v231 = vld [vmem:[#allocation5 + $0x58] sm:$0xff]
        %v232 = vld [vmem:[#allocation5 + $0x60] sm:$0xff]
        %v233 = vld [vmem:[#allocation5 + $0x68] sm:$0xff]
        %v234 = vld [vmem:[#allocation5 + $0x70] sm:$0xff]
        %v235 = vld [vmem:[#allocation5 + $0x78] sm:$0xff]
        %236 = vmatprep.subr.mxu0 0.0
        %237 = vmatpush1.xpose.msra.mxu0 %v220
        %238 = vmatprep.subr.mxu0 0.0
        %239 = vmatpush1.xpose.msra.mxu0 %v221
        %240 = vmatprep.subr.mxu0 0.0
        %241 = vmatpush1.xpose.msra.mxu0 %v222
        %242 = vmatprep.subr.mxu0 0.0
        %243 = vmatpush1.xpose.msra.mxu0 %v223
        %244 = vmatprep.subr.mxu0 0.0
        %245 = vmatpush1.xpose.msra.mxu0 %v224
        %246 = vmatprep.subr.mxu0 0.0
        %247 = vmatpush1.xpose.msra.mxu0 %v225
        %248 = vmatprep.subr.mxu0 0.0
        %249 = vmatpush1.xpose.msra.mxu0 %v226
        %250 = vmatprep.subr.mxu0 0.0
        %251 = vmatpush1.xpose.msra.mxu0 %v227
        %252 = vmatprep.subr.mxu0 0.0
        %253 = vmatpush1.xpose.msra.mxu0 %v228
        %254 = vmatprep.subr.mxu0 0.0
        %255 = vmatpush1.xpose.msra.mxu0 %v229
        %256 = vmatprep.subr.mxu0 0.0
        %257 = vmatpush1.xpose.msra.mxu0 %v230
        %258 = vmatprep.subr.mxu0 0.0
        %259 = vmatpush1.xpose.msra.mxu0 %v231
        %260 = vmatprep.subr.mxu0 0.0
        %261 = vmatpush1.xpose.msra.mxu0 %v232
        %262 = vmatprep.subr.mxu0 0.0
        %263 = vmatpush1.xpose.msra.mxu0 %v233
        %264 = vmatprep.subr.mxu0 0.0
        %265 = vmatpush1.xpose.msra.mxu0 %v234
        %266 = vmatprep.subr.mxu0 0.0
        %267 = vmatpush1.xpose.msra.mxu0 %v235
        %268 = vmatprep.subr.mxu0 0.0
        %269 = vmatpush1.xpose.msra.mxu0 0.0
        %270 = vmatprep.subr.mxu0 0.0
        %271 = vmatpush1.xpose.msra.mxu0 0.0
        %272 = vmatprep.subr.mxu0 0.0
        %273 = vmatpush1.xpose.msra.mxu0 0.0
        %274 = vmatprep.subr.mxu0 0.0
        %275 = vmatpush1.xpose.msra.mxu0 0.0
        %276 = vmatprep.subr.mxu0 0.0
        %277 = vmatpush1.xpose.msra.mxu0 0.0
        %278 = vmatprep.subr.mxu0 0.0
        %279 = vmatpush1.xpose.msra.mxu0 0.0
        %280 = vmatprep.subr.mxu0 0.0
        %281 = vmatpush1.xpose.msra.mxu0 0.0
        %282 = vmatprep.subr.mxu0 0.0
        %283 = vmatpush1.xpose.msra.mxu0 0.0
        %284 = vmatprep.subr.mxu0 0.0
        %285 = vmatpush1.xpose.msra.mxu0 0.0
        %286 = vmatprep.subr.mxu0 0.0
        %287 = vmatpush1.xpose.msra.mxu0 0.0
        %288 = vmatprep.subr.mxu0 0.0
        %289 = vmatpush1.xpose.msra.mxu0 0.0
        %290 = vmatprep.subr.mxu0 0.0
        %291 = vmatpush1.xpose.msra.mxu0 0.0
        %292 = vmatprep.subr.mxu0 0.0
        %293 = vmatpush1.xpose.msra.mxu0 0.0
        %294 = vmatprep.subr.mxu0 0.0
        %295 = vmatpush1.xpose.msra.mxu0 0.0
        %296 = vmatprep.subr.mxu0 0.0
        %297 = vmatpush1.xpose.msra.mxu0 0.0
        %298 = vmatprep.subr.mxu0 0.0
        %299 = vmatpush1.xpose.msra.mxu0 0.0
        %300 = vmatprep.mubr.f32.mxu0 0.0
        %301 = vmatmul.mubr.f32.gmra.mrb[0].mxu0 %v218
        %v302 = vpop.f32.mrb[0].mxu0
        %v303 = vadd.f32 0.0, %v302
        %v304 = vpop.f32.mrb[0].mxu0
        %305 = vmatprep.mubr.f32.mxu0 0.0
        %306 = vmatmul.mubr.f32.gmra.mrb[0].mxu0 %v219
        %v307 = vpop.f32.mrb[0].mxu0
        %v308 = vadd.f32 0.0, %v307
        %v309 = vpop.f32.mrb[0].mxu0
        %310 = vdwg.mxu0
        %v311 = vlaneseq
        %v312 = vand.u32 %v311, 127
        %vm313 = vcmp.lt.s32.totalorder %v312, 64
        %v314 = vsel %vm313, %v303, -inf
        %v315 = vsel %vm313, %v308, -inf
        %316 = vmax.xlane.f32.xlu0 %v314
        %v317 = vpop.xlane.xlu0 %316
        %318 = vmax.xlane.f32.xlu0 %v315
        %v319 = vpop.xlane.xlu0 %318
        %v320 = vsub.f32 %v314, %v317
        %v321 = vsub.f32 %v315, %v319
        %v322 = vmul.f32 %v320, 1.442695
        %v323 = vpow.pop %v322
        %v324 = vmul.f32 %v321, 1.442695
        %v325 = vpow.pop %v324
        %326 = vadd.xlane.f32.xlu0 %v323
        %v327 = vpop.xlane.xlu0 %326
        %328 = vadd.xlane.f32.xlu0 %v325
        %v329 = vpop.xlane.xlu0 %328
        %v330 = vrcp.pop %v327
        %v331 = vrcp.pop %v329
        %v332 = vmul.f32 %v327, %v330
        %v333 = vmul.f32 %v329, %v331
        %v334 = vsub.f32 2.0, %v332
        %v335 = vsub.f32 2.0, %v333
        %v336 = vmul.f32 %v330, %v334
        %v337 = vmul.f32 %v331, %v335
        %v338 = vmul.f32 %v327, %v336
        %v339 = vmul.f32 %v329, %v337
        %v340 = vsub.f32 2.0, %v338
        %v341 = vsub.f32 2.0, %v339
        %v342 = vmul.f32 %v336, %v340
        %v343 = vmul.f32 %v337, %v341
        %v344 = vmul.f32 %v323, %v342
        %v345 = vmul.f32 %v325, %v343
        %v346 = vsub.f32 %v344, 0.0005
        %v347 = vsub.f32 %v345, 0.0005
        %v348 = vmax.f32 %v346, 0.0
        %v349 = vmax.f32 %v347, 0.0
        %v350 = vmul.f32 %v348, %v344
        %v351 = vmul.f32 %v349, %v345
        %v352 = vand.u32 2147483647, %v346
        %v353 = vand.u32 2147483647, %v347
        %v354 = vadd.f32 %v352, 1e-12
        %v355 = vadd.f32 %v353, 1e-12
        %v356 = vrcp.pop %v354
        %v357 = vrcp.pop %v355
        %v358 = vmul.f32 %v354, %v356
        %v359 = vmul.f32 %v355, %v357
        %v360 = vsub.f32 2.0, %v358
        %v361 = vsub.f32 2.0, %v359
        %v362 = vmul.f32 %v356, %v360
        %v363 = vmul.f32 %v357, %v361
        %v364 = vmul.f32 %v354, %v362
        %v365 = vmul.f32 %v355, %v363
        %v366 = vsub.f32 2.0, %v364
        %v367 = vsub.f32 2.0, %v365
        %v368 = vmul.f32 %v362, %v366
        %v369 = vmul.f32 %v363, %v367
        %v370 = vmul.f32 %v350, %v368
        %v371 = vmul.f32 %v351, %v369
        %v372 = vand.u32 2147483647, %v370
        %v373 = vand.u32 2147483647, %v371
        %374 = vadd.xlane.f32.xlu0 %v372
        %v375 = vpop.xlane.xlu0 %374
        %376 = vadd.xlane.f32.xlu0 %v373
        %v377 = vpop.xlane.xlu0 %376
        %v378 = vmax.f32 %v375, 1e-12
        %v379 = vmax.f32 %v377, 1e-12
        %v380 = vrcp.pop %v378
        %v381 = vrcp.pop %v379
        %v382 = vmul.f32 %v378, %v380
        %v383 = vmul.f32 %v379, %v381
        %v384 = vsub.f32 2.0, %v382
        %v385 = vsub.f32 2.0, %v383
        %v386 = vmul.f32 %v380, %v384
        %v387 = vmul.f32 %v381, %v385
        %v388 = vmul.f32 %v378, %v386
        %v389 = vmul.f32 %v379, %v387
        %v390 = vsub.f32 2.0, %v388
        %v391 = vsub.f32 2.0, %v389
        %v392 = vmul.f32 %v386, %v390
        %v393 = vmul.f32 %v387, %v391
        %v394 = vmul.f32 %v370, %v392
        %v395 = vmul.f32 %v371, %v393
        %v396 = vmul.f32 %v218, 0.9
        %v397 = vmul.f32 %v219, 0.9
        %398 = vmatprep.subr.mxu0 0.0
        %399 = vmatpush1.msra.mxu0 %v220
        %400 = vmatprep.subr.mxu0 0.0
        %401 = vmatpush1.msra.mxu0 %v221
        %402 = vmatprep.subr.mxu0 0.0
        %403 = vmatpush1.msra.mxu0 %v222
        %404 = vmatprep.subr.mxu0 0.0
        %405 = vmatpush1.msra.mxu0 %v223
        %406 = vmatprep.subr.mxu0 0.0
        %407 = vmatpush1.msra.mxu0 %v224
        %408 = vmatprep.subr.mxu0 0.0
        %409 = vmatpush1.msra.mxu0 %v225
        %410 = vmatprep.subr.mxu0 0.0
        %411 = vmatpush1.msra.mxu0 %v226
        %412 = vmatprep.subr.mxu0 0.0
        %413 = vmatpush1.msra.mxu0 %v227
        %414 = vmatprep.subr.mxu0 0.0
        %415 = vmatpush1.msra.mxu0 %v228
        %416 = vmatprep.subr.mxu0 0.0
        %417 = vmatpush1.msra.mxu0 %v229
        %418 = vmatprep.subr.mxu0 0.0
        %419 = vmatpush1.msra.mxu0 %v230
        %420 = vmatprep.subr.mxu0 0.0
        %421 = vmatpush1.msra.mxu0 %v231
        %422 = vmatprep.subr.mxu0 0.0
        %423 = vmatpush1.msra.mxu0 %v232
        %424 = vmatprep.subr.mxu0 0.0
        %425 = vmatpush1.msra.mxu0 %v233
        %426 = vmatprep.subr.mxu0 0.0
        %427 = vmatpush1.msra.mxu0 %v234
        %428 = vmatprep.subr.mxu0 0.0
        %429 = vmatpush1.msra.mxu0 %v235
        %430 = vmatprep.subr.mxu0 0.0
        %431 = vmatpush1.msra.mxu0 0.0
        %432 = vmatprep.subr.mxu0 0.0
        %433 = vmatpush1.msra.mxu0 0.0
        %434 = vmatprep.subr.mxu0 0.0
        %435 = vmatpush1.msra.mxu0 0.0
        %436 = vmatprep.subr.mxu0 0.0
        %437 = vmatpush1.msra.mxu0 0.0
        %438 = vmatprep.subr.mxu0 0.0
        %439 = vmatpush1.msra.mxu0 0.0
        %440 = vmatprep.subr.mxu0 0.0
        %441 = vmatpush1.msra.mxu0 0.0
        %442 = vmatprep.subr.mxu0 0.0
        %443 = vmatpush1.msra.mxu0 0.0
        %444 = vmatprep.subr.mxu0 0.0
        %445 = vmatpush1.msra.mxu0 0.0
        %446 = vmatprep.subr.mxu0 0.0
        %447 = vmatpush1.msra.mxu0 0.0
        %448 = vmatprep.subr.mxu0 0.0
        %449 = vmatpush1.msra.mxu0 0.0
        %450 = vmatprep.subr.mxu0 0.0
        %451 = vmatpush1.msra.mxu0 0.0
        %452 = vmatprep.subr.mxu0 0.0
        %453 = vmatpush1.msra.mxu0 0.0
        %454 = vmatprep.subr.mxu0 0.0
        %455 = vmatpush1.msra.mxu0 0.0
        %456 = vmatprep.subr.mxu0 0.0
        %457 = vmatpush1.msra.mxu0 0.0
        %458 = vmatprep.subr.mxu0 0.0
        %459 = vmatpush1.msra.mxu0 0.0
        %460 = vmatprep.subr.mxu0 0.0
        %461 = vmatpush1.msra.mxu0 0.0
        %462 = vmatprep.mubr.f32.mxu0 0.0
        %463 = vmatmul.mubr.f32.gmra.mrb[0].mxu0 %v394
        %v464 = vpop.f32.mrb[0].mxu0
        %v465 = vadd.f32 %v396, %v464
        %v466 = vpop.f32.mrb[0].mxu0
        %467 = vmatprep.mubr.f32.mxu0 0.0
        %468 = vmatmul.mubr.f32.gmra.mrb[0].mxu0 %v395
        %v469 = vpop.f32.mrb[0].mxu0
        %v470 = vadd.f32 %v397, %v469
        %v471 = vpop.f32.mrb[0].mxu0
        %472 = vdwg.mxu0
        %473 = vst [vmem:[%s207] sm:$0xff] %v465
        %474 = vst [vmem:[%s207 + $0x8] sm:$0xff] %v470
        %475 = vst [vmem:[%s214] sm:$0xff] %v394
        %476 = vst [vmem:[%s214 + $0x8] sm:$0xff] %v395
        %s477 = sand.u32 %s80, 1
        %s478 = scalar_lea.sflag [#allocation4], %s477
        %s479 = sand.u32 %s80, 1
        %s480 = smul.addr %s479, 16
        %s481 = scalar_lea.vmem [#allocation7], %s480
        %s482 = sand.u32 %s106, 1
        %s483 = scalar_lea.sflag [#allocation9], %s482
        %s484 = sand.u32 %s106, 1
        %s485 = smul.addr %s484, 16
        %s486 = scalar_lea.vmem [#allocation8], %s485
        // Predicated region
        $region37: #{tpu_custom_call.1} parent=27 // pred_check
          %p487 = pneg %p90
        $region38: #{tpu_custom_call.1} parent=27 // pred_check_branch
          %489 = sbr.rel (%p487) target = $region40
        $region39: #{tpu_custom_call.1} parent=27 // pred_region
          %s490 = smul.u32 2, %s25
          %s492 = ssub.s32 256, 256
          %493 = vsyncadd %s478, %s492
          %s494 = smul.addr %s490, 128
          %s495 = scalar_lea.hbm %s2, %s494
          %s496 = sshll.u32 %s481, 4
          %s497 = int_to_ptr.vmem [resolvable:$true] %s496
          %502 = dma.vmem_to_hbm [thread:$0]  %s497, 256, %s495, %s478, 128, 128, 8
        $region40: #{tpu_custom_call.1} parent=27 // pred_fallthru
          _
        // Predicated region
        $region41: #{tpu_custom_call.1} parent=27 // pred_check
          %p503 = pneg %p116
        $region42: #{tpu_custom_call.1} parent=27 // pred_check_branch
          %505 = sbr.rel (%p503) target = $region44
        $region43: #{tpu_custom_call.1} parent=27 // pred_region
          %s506 = smul.u32 2, %s25
          %s508 = ssub.s32 256, 256
          %509 = vsyncadd %s483, %s508
          %s510 = smul.addr %s506, 128
          %s511 = scalar_lea.hbm %s3, %s510
          %s512 = sshll.u32 %s486, 4
          %s513 = int_to_ptr.vmem [resolvable:$true] %s512
          %518 = dma.vmem_to_hbm [thread:$0]  %s513, 256, %s511, %s483, 128, 128, 8
        $region44: #{tpu_custom_call.1} parent=27 // pred_fallthru
          _
      $region28: #{tpu_custom_call.1} parent=5 // pred_fallthru
        _
      %p519 = scmp.le.s32.totalorder 2, %s20
      // Predicated region
      $region45: #{tpu_custom_call.1} parent=5 // pred_check
        %p520 = pneg %p519
      $region46: #{tpu_custom_call.1} parent=5 // pred_check_branch
        %522 = sbr.rel (%p520) target = $region48
      $region47: #{tpu_custom_call.1} parent=5 // pred_region
        %s523 = ssub.s32 %s20, 2
        // Predicated region
        $region49: #{tpu_custom_call.1} parent=47 // pred_check
          %p524 = pneg %p96
        $region50: #{tpu_custom_call.1} parent=47 // pred_check_branch
          %526 = sbr.rel (%p524) target = $region52
        $region51: #{tpu_custom_call.1} parent=47 // pred_region
          %s527 = sand.u32 %s81, 1
          %s528 = scalar_lea.sflag [#allocation4], %s527
          %s529 = sand.u32 %s81, 1
          %s530 = smul.addr %s529, 16
          %s531 = scalar_lea.vmem [#allocation7], %s530
          %532 = dma.done %s528, 256
        $region52: #{tpu_custom_call.1} parent=47 // pred_fallthru
          _
        // Predicated region
        $region53: #{tpu_custom_call.1} parent=47 // pred_check
          %p533 = pneg %p122
        $region54: #{tpu_custom_call.1} parent=47 // pred_check_branch
          %535 = sbr.rel (%p533) target = $region56
        $region55: #{tpu_custom_call.1} parent=47 // pred_region
          %s536 = sand.u32 %s107, 1
          %s537 = scalar_lea.sflag [#allocation9], %s536
          %s538 = sand.u32 %s107, 1
          %s539 = smul.addr %s538, 16
          %s540 = scalar_lea.vmem [#allocation8], %s539
          %541 = dma.done %s537, 256
        $region56: #{tpu_custom_call.1} parent=47 // pred_fallthru
          _
      $region48: #{tpu_custom_call.1} parent=5 // pred_fallthru
        _
    $region6: #{tpu_custom_call.1} parent=1 // loop_footer
      %s24 = sadd.s32 1, %s20
    $region7: #{tpu_custom_call.1} parent=1 // loop_footer_branch
      %19 = sbr.rel target = $region3
    $region8: #{tpu_custom_call.1} parent=1 // loop_exit
      _
    %542 = vsyncpa [#allocation3], 1
    %s543 = scalar_lea.sflag [#allocation3], 1
    %544 = vsyncpa %s543, 1
    %545 = vsyncpa [#allocation6], 1
    %546 = vsyncpa [#allocation4], 1
    %s547 = scalar_lea.sflag [#allocation4], 1
    %548 = vsyncpa %s547, 1
    %549 = vsyncpa [#allocation9], 1
    %s550 = scalar_lea.sflag [#allocation9], 1
    %551 = vsyncpa %s550, 1

</llo_original>
